<compile_context>
chip_gen: v6e
topology: v6e:2x2x1
jax: 0.10.0
libtpu: 0.0.40
codegen_flags: <defaults>
</compile_context>

<pallas_src>
import jax
import jax.numpy as jnp
from jax.experimental import pallas as pl
from jax.experimental.pallas import tpu as pltpu


def _pool_sum_kernel(x_ref, sum_ref):
    # x_ref: (1, C, T) input tile.  sum_ref: (1, C, 1) f32 accumulator that is
    # resident across the HW-tile grid axis (same output block index).
    @pl.when(pl.program_id(1) == 0)
    def _():
        sum_ref[...] = jnp.zeros_like(sum_ref)

    sum_ref[...] += jnp.sum(
        x_ref[...].astype(jnp.float32), axis=-1, keepdims=True)


def _rescale_kernel(x_ref, s_ref, o_ref):
    # x_ref/o_ref: (1, C, T); s_ref: (1, C, 1) already cast to x's dtype.
    # Pure VPU broadcast-multiply; lane-dense (T % 128 == 0) unmasked stores.
    o_ref[...] = x_ref[...] * s_ref[...]


def _round_up(a, b):
    return ((a + b - 1) // b) * b


def _pick_tiling(hw, c, itemsize, target_block_bytes=1 << 20):
    """Pick (T, n_hw, hw_pad): lane-dense HW tile targeting ~1MiB blocks."""
    hw128 = _round_up(hw, 128)
    t_budget = (target_block_bytes // max(1, c * itemsize)) // 128 * 128
    t_budget = max(128, min(hw128, t_budget))
    n_hw = -(-hw128 // t_budget)                    # cdiv
    t = _round_up(-(-hw128 // n_hw), 128)           # <= t_budget by construction
    hw_pad = n_hw * t
    return t, n_hw, hw_pad


@jax.jit
def ca_layer(x, w1, b1, w2, b2):
    """x: (N, C, H, W); returns x * sigmoid(W2 relu(W1 avgpool(x)+b1)+b2)."""
    N, C, H, W = x.shape
    HW = H * W
    itemsize = x.dtype.itemsize
    T, n_hw, hw_pad = _pick_tiling(HW, C, itemsize)

    x_flat = x.reshape(N, C, HW)
    if hw_pad != HW:
        # Zero padding: does not perturb the sum; padded region sliced off at end.
        x_flat = jnp.pad(x_flat, ((0, 0), (0, 0), (0, hw_pad - HW)))

    # ---- Pass 1: tiled global spatial sum per channel (f32 accumulation) ----
    pooled_sum = pl.pallas_call(
        _pool_sum_kernel,
        out_shape=jax.ShapeDtypeStruct((N, C, 1), jnp.float32),
        grid_spec=pltpu.PrefetchScalarGridSpec(
            num_scalar_prefetch=0,
            grid=(N, n_hw),
            in_specs=[pl.BlockSpec((1, C, T), lambda n, t: (n, 0, t))],
            out_specs=pl.BlockSpec((1, C, 1), lambda n, t: (n, 0, 0)),
        ),
        compiler_params=pltpu.CompilerParams(
            dimension_semantics=("parallel", "arbitrary"),
            vmem_limit_bytes=32 * 1024 * 1024,
        ),
        cost_estimate=pl.CostEstimate(
            flops=N * C * hw_pad,
            transcendentals=0,
            bytes_accessed=N * C * hw_pad * itemsize + N * C * 4,
        ),
    )(x_flat)

    # ---- Squeeze-excite MLP: tiny batched matmuls in plain XLA -------------
    pooled = pooled_sum[:, :, 0] * (1.0 / HW)                       # (N, C) f32
    h = jax.nn.relu(pooled @ w1.T.astype(jnp.float32)
                    + b1.astype(jnp.float32))                       # (N, Cr)
    s = jax.nn.sigmoid(h @ w2.T.astype(jnp.float32)
                       + b2.astype(jnp.float32))                    # (N, C)
    s = s.astype(x.dtype).reshape(N, C, 1)

    # ---- Pass 2: lane-dense channel-wise rescale in native dtype -----------
    out = pl.pallas_call(
        _rescale_kernel,
        out_shape=jax.ShapeDtypeStruct((N, C, hw_pad), x.dtype),
        grid_spec=pltpu.PrefetchScalarGridSpec(
            num_scalar_prefetch=0,
            grid=(N, n_hw),
            in_specs=[
                pl.BlockSpec((1, C, T), lambda n, t: (n, 0, t)),
                pl.BlockSpec((1, C, 1), lambda n, t: (n, 0, 0)),
            ],
            out_specs=pl.BlockSpec((1, C, T), lambda n, t: (n, 0, t)),
        ),
        compiler_params=pltpu.CompilerParams(
            dimension_semantics=("parallel", "parallel"),
            vmem_limit_bytes=32 * 1024 * 1024,
        ),
        cost_estimate=pl.CostEstimate(
            flops=N * C * hw_pad,
            transcendentals=0,
            bytes_accessed=2 * N * C * hw_pad * itemsize + N * C * itemsize,
        ),
    )(x_flat, s)

    return out[:, :, :HW].reshape(N, C, H, W)


def ca_layer_ref(x, w1, b1, w2, b2):
    """Pure-JAX reference matching the PyTorch forward semantics."""
    pooled = jnp.mean(x, axis=(2, 3))                      # (N, C)
    h = jnp.maximum(pooled @ w1.T + b1, 0.0)               # (N, Cr)
    s = jax.nn.sigmoid(h @ w2.T + b2)                      # (N, C)
    return x * s[:, :, None, None]


def _make_params(key, C, Cr, dtype):
    k1, k2, k3, k4 = jax.random.split(key, 4)
    # Conv2d(C, Cr, 1) weight (Cr, C, 1, 1) -> stored as (Cr, C); bias (Cr,)
    w1 = (jax.random.normal(k1, (Cr, C)) * 0.1).astype(dtype)
    b1 = (jax.random.normal(k2, (Cr,)) * 0.1).astype(dtype)
    # Conv2d(Cr, C, 1) weight (C, Cr, 1, 1) -> stored as (C, Cr); bias (C,)
    w2 = (jax.random.normal(k3, (C, Cr)) * 0.1).astype(dtype)
    b2 = (jax.random.normal(k4, (C,)) * 0.1).astype(dtype)
    return w1, b1, w2, b2


if __name__ == "__main__":
    key = jax.random.PRNGKey(0)
    kp, kx1, kx2 = jax.random.split(key, 3)

    # Case 1: small shapes consistent with the module (channel % reduction == 0),
    # HW already lane-dense (16*16 = 256).
    N, C, H, W = 2, 32, 16, 16
    reduction = 4
    Cr = C // reduction
    w1, b1, w2, b2 = _make_params(kp, C, Cr, jnp.float32)

    x = jax.random.normal(kx1, (N, C, H, W), dtype=jnp.float32)
    out = jax.block_until_ready(ca_layer(x, w1, b1, w2, b2))
    ref = ca_layer_ref(x, w1, b1, w2, b2)
    assert out.shape == ref.shape == (N, C, H, W)
    assert jnp.allclose(out, ref, atol=1e-5, rtol=1e-5), "mismatch (case 1)"

    # Case 2: exercise the padded path (HW = 100, not a multiple of 128).
    H2 = W2 = 10
    x2 = jax.random.normal(kx2, (N, C, H2, W2), dtype=jnp.float32)
    out2 = jax.block_until_ready(ca_layer(x2, w1, b1, w2, b2))
    ref2 = ca_layer_ref(x2, w1, b1, w2, b2)
    assert out2.shape == ref2.shape == (N, C, H2, W2)
    assert jnp.allclose(out2, ref2, atol=1e-5, rtol=1e-5), "mismatch (case 2)"

    print("KERNEL_OK")
</pallas_src>

<mosaic_0001>
module attributes {stable_mosaic.version = 11 : i64} {
  func.func @_pool_sum_kernel(%arg0: i32, %arg1: i32, %arg2: memref<1x32x256xf32, #tpu.memory_space<vmem>>, %arg3: memref<1x32x1xf32, #tpu.memory_space<vmem>>) attributes {dimension_semantics = [#tpu.dimension_semantics<parallel>, #tpu.dimension_semantics<arbitrary>], iteration_bounds = array<i64: 2, 1>, scalar_prefetch = 0 : i64, scratch_operands = 0 : i64, tpu.core_type = #tpu.core_type<tc>, window_params = [{transform_indices = @transform_0, window_bounds = array<i64: 1, 32, 256>}, {transform_indices = @transform_1, window_bounds = array<i64: 1, 32, 1>}]} {
    %c0_i32 = arith.constant 0 : i32
    %0 = arith.cmpi eq, %arg1, %c0_i32 : i32
    %1 = arith.extui %0 : i1 to i32
    %c0_i32_0 = arith.constant 0 : i32
    %2 = arith.cmpi ne, %1, %c0_i32_0 : i32
    scf.if %2 {
      %cst_9 = arith.constant 0.000000e+00 : f32
      %9 = vector.broadcast %cst_9 : f32 to vector<1x32x1xf32>
      %c0_10 = arith.constant 0 : index
      %c0_11 = arith.constant 0 : index
      %c0_12 = arith.constant 0 : index
      %10 = vector.load %arg3[%c0_10, %c0_11, %c0_12] : memref<1x32x1xf32, #tpu.memory_space<vmem>>, vector<1x32x1xf32>
      tpu.vector_store %arg3[%c0_10, %c0_11, %c0_12], %9 {strides = array<i32>} : memref<1x32x1xf32, #tpu.memory_space<vmem>>, vector<1x32x1xf32>,
    } else {
    }
    %c0 = arith.constant 0 : index
    %c0_1 = arith.constant 0 : index
    %c0_2 = arith.constant 0 : index
    %3 = vector.load %arg3[%c0, %c0_1, %c0_2] : memref<1x32x1xf32, #tpu.memory_space<vmem>>, vector<1x32x1xf32>
    %c0_3 = arith.constant 0 : index
    %c0_4 = arith.constant 0 : index
    %c0_5 = arith.constant 0 : index
    %4 = vector.load %arg2[%c0_3, %c0_4, %c0_5] : memref<1x32x256xf32, #tpu.memory_space<vmem>>, vector<1x32x256xf32>
    %cst = arith.constant dense<0.000000e+00> : vector<1x32xf32>
    %5 = vector.multi_reduction <add>, %4, %cst [2] : vector<1x32x256xf32> to vector<1x32xf32>
    %6 = vector.shape_cast %5 : vector<1x32xf32> to vector<1x32x1xf32>
    %7 = arith.addf %3, %6 : vector<1x32x1xf32>
    %c0_6 = arith.constant 0 : index
    %c0_7 = arith.constant 0 : index
    %c0_8 = arith.constant 0 : index
    %8 = vector.load %arg3[%c0_6, %c0_7, %c0_8] : memref<1x32x1xf32, #tpu.memory_space<vmem>>, vector<1x32x1xf32>
    tpu.vector_store %arg3[%c0_6, %c0_7, %c0_8], %7 {strides = array<i32>} : memref<1x32x1xf32, #tpu.memory_space<vmem>>, vector<1x32x1xf32>,
    return
  }
  func.func @transform_0(%arg0: i32, %arg1: i32) -> (i32, i32, i32) {
    %c0_i32 = arith.constant 0 : i32
    %c0_i32_0 = arith.constant 0 : i32
    return %arg0, %c0_i32, %arg1 : i32, i32, i32
  }
  func.func @transform_1(%arg0: i32, %arg1: i32) -> (i32, i32, i32) {
    %c0_i32 = arith.constant 0 : i32
    %c0_i32_0 = arith.constant 0 : i32
    %c0_i32_1 = arith.constant 0 : i32
    return %arg0, %c0_i32, %c0_i32_0 : i32, i32, i32
  }
}

module attributes {stable_mosaic.version = 11 : i64} {
  func.func @_rescale_kernel(%arg0: i32, %arg1: i32, %arg2: memref<1x32x256xf32, #tpu.memory_space<vmem>>, %arg3: memref<1x32x1xf32, #tpu.memory_space<vmem>>, %arg4: memref<1x32x256xf32, #tpu.memory_space<vmem>>) attributes {dimension_semantics = [#tpu.dimension_semantics<parallel>, #tpu.dimension_semantics<parallel>], iteration_bounds = array<i64: 2, 1>, scalar_prefetch = 0 : i64, scratch_operands = 0 : i64, tpu.core_type = #tpu.core_type<tc>, window_params = [{transform_indices = @transform_0, window_bounds = array<i64: 1, 32, 256>}, {transform_indices = @transform_1, window_bounds = array<i64: 1, 32, 1>}, {transform_indices = @transform_2, window_bounds = array<i64: 1, 32, 256>}]} {
    %c0 = arith.constant 0 : index
    %c0_0 = arith.constant 0 : index
    %c0_1 = arith.constant 0 : index
    %0 = vector.load %arg2[%c0, %c0_0, %c0_1] : memref<1x32x256xf32, #tpu.memory_space<vmem>>, vector<1x32x256xf32>
    %c0_2 = arith.constant 0 : index
    %c0_3 = arith.constant 0 : index
    %c0_4 = arith.constant 0 : index
    %1 = vector.load %arg3[%c0_2, %c0_3, %c0_4] : memref<1x32x1xf32, #tpu.memory_space<vmem>>, vector<1x32x1xf32>
    %2 = vector.broadcast %1 : vector<1x32x1xf32> to vector<1x32x256xf32>
    %3 = arith.mulf %0, %2 : vector<1x32x256xf32>
    %c0_5 = arith.constant 0 : index
    %c0_6 = arith.constant 0 : index
    %c0_7 = arith.constant 0 : index
    %4 = vector.load %arg4[%c0_5, %c0_6, %c0_7] : memref<1x32x256xf32, #tpu.memory_space<vmem>>, vector<1x32x256xf32>
    tpu.vector_store %arg4[%c0_5, %c0_6, %c0_7], %3 {strides = array<i32>} : memref<1x32x256xf32, #tpu.memory_space<vmem>>, vector<1x32x256xf32>,
    return
  }
  func.func @transform_0(%arg0: i32, %arg1: i32) -> (i32, i32, i32) {
    %c0_i32 = arith.constant 0 : i32
    %c0_i32_0 = arith.constant 0 : i32
    return %arg0, %c0_i32, %arg1 : i32, i32, i32
  }
  func.func @transform_1(%arg0: i32, %arg1: i32) -> (i32, i32, i32) {
    %c0_i32 = arith.constant 0 : i32
    %c0_i32_0 = arith.constant 0 : i32
    %c0_i32_1 = arith.constant 0 : i32
    return %arg0, %c0_i32, %c0_i32_0 : i32, i32, i32
  }
  func.func @transform_2(%arg0: i32, %arg1: i32) -> (i32, i32, i32) {
    %c0_i32 = arith.constant 0 : i32
    %c0_i32_0 = arith.constant 0 : i32
    return %arg0, %c0_i32, %arg1 : i32, i32, i32
  }
}

</mosaic_0001>

<llo_original>
// kernel: ca_layer.2
$region0: #{ca_layer.2}
  #allocation0 [shape = 'u32[]', space=smem, size = 0x4, offset = 0x4, fixed_abs, tag = 'smem constant byte address 0x4 - core index']
  #allocation1 [shape = 'u32[144,128]{1,0:T(1,128)}', space=vmem, size = 0x12000, scoped, tag = 'internal scratch']
  %s0 = inlined_call_operand.vmem [shape: f32[2,32,256], index: 0, kind: input, shape index: {}]
  %s1 = inlined_call_operand.vmem [shape: f32[2,32,1], index: 1, kind: output, shape index: {}]
  %s2 = sld [smem:[#allocation0]]
  $region41: #{ca_layer.2} parent=0
    _
  %s4 = ssub.s32 1, %s2
  %s5 = scalar_select 0, %s4, %s2
  loop: start=0, step=1, limit=4
  $region2: #{ca_layer.2} parent=0 // loop_pre_header
    _
  $region3: #{ca_layer.2} parent=0 // loop_header
    %s7 = sphi 0, %s11
    %p8 = scmp.ge.s32.totalorder %s7, 4
    %s14 = sphi 0, %s26
    %s15 = sphi 0, %s22
    %s16 = sphi 0, %s14
    %s17 = sphi 0, %s15
    %s18 = sphi 0, %s16
    %s19 = sphi 0, %s17
    %s31 = sphi 0, %s33
    %s34 = sphi 0, %s31
    %s35 = sphi 0, %s34
    %s51 = sphi 0, %s35
    %s57 = sphi 0, %s59
    %s60 = sphi 0, %s57
    %s61 = sphi 0, %s60
    %s77 = sphi 0, %s61
  $region4: #{ca_layer.2} parent=0 // loop_header_branch
    %10 = sbr.rel (%p8) target = $region8
  $region5: #{ca_layer.2} parent=0 // loop_body
    %s12 = ssub.s32 %s7, 1
    %s13 = ssub.s32 %s7, 2
    %s20 = sadd.s32 1, %s15
    %p21 = scmp.ge.s32.totalorder %s20, 1
    %s22 = scalar_select %p21, 0, %s20
    %s23 = sadd.s32 1, %s14
    %s24 = scalar_select %p21, %s23, %s14
    %p25 = scmp.ge.s32.totalorder %s24, 2
    %s26 = scalar_select %p25, 0, %s24
    %s27 = ssub.s32 %s14, %s26
    %s28 = ssub.s32 %s15, %s22
    %s29 = sor.u32 %s27, %s28
    %p30 = scmp.eq.s32.totalorder %s29, 0
    %s32 = sadd.s32 %s31, 1
    %s33 = scalar_select %p30, %s31, %s32
    %p36 = pneg %p30
    %p37 = scmp.eq.s32.totalorder %s7, 1
    %p38 = por %p36, %p37
    %p39 = scmp.ne.s32.totalorder %s31, %s34
    %p40 = scmp.eq.s32.totalorder %s7, 0
    %p41 = por %p39, %p40
    %p42 = scmp.ne.s32.totalorder %s31, %s34
    %p43 = scmp.eq.s32.totalorder %s12, 1
    %p44 = por %p42, %p43
    %p45 = scmp.ne.s32.totalorder %s34, %s35
    %p46 = scmp.eq.s32.totalorder %s12, 0
    %p47 = por %p45, %p46
    %p48 = scmp.ne.s32.totalorder %s34, %s35
    %p49 = scmp.eq.s32.totalorder %s13, 1
    %p50 = por %p48, %p49
    %p52 = scmp.ne.s32.totalorder %s35, %s51
    %p53 = scmp.eq.s32.totalorder %s13, 0
    %p54 = por %p52, %p53
    %s55 = ssub.s32 %s14, %s26
    %p56 = scmp.eq.s32.totalorder %s55, 0
    %s58 = sadd.s32 %s57, 1
    %s59 = scalar_select %p56, %s57, %s58
    %p62 = pneg %p56
    %p63 = scmp.eq.s32.totalorder %s7, 1
    %p64 = por %p62, %p63
    %p65 = scmp.ne.s32.totalorder %s57, %s60
    %p66 = scmp.eq.s32.totalorder %s7, 0
    %p67 = por %p65, %p66
    %p68 = scmp.ne.s32.totalorder %s57, %s60
    %p69 = scmp.eq.s32.totalorder %s12, 1
    %p70 = por %p68, %p69
    %p71 = scmp.ne.s32.totalorder %s60, %s61
    %p72 = scmp.eq.s32.totalorder %s12, 0
    %p73 = por %p71, %p72
    %p74 = scmp.ne.s32.totalorder %s60, %s61
    %p75 = scmp.eq.s32.totalorder %s13, 1
    %p76 = por %p74, %p75
    %p78 = scmp.ne.s32.totalorder %s61, %s77
    %p79 = scmp.eq.s32.totalorder %s13, 0
    %p80 = por %p78, %p79
    %p81 = scmp.le.s32.totalorder 1, %s7
    %p82 = scmp.lt.s32.totalorder %s7, 3
    %p83 = pnand %p81, %p82
    %p84 = pneg %p83
    // Predicated region
    $region9: #{ca_layer.2} parent=5 // pred_check
      _
    $region10: #{ca_layer.2} parent=5 // pred_check_branch
      %86 = sbr.rel (%p83) target = $region12
    $region11: #{ca_layer.2} parent=5 // pred_region
      %s87 = ssub.s32 %s7, 1
    $region12: #{ca_layer.2} parent=5 // pred_fallthru
      _
    %p88 = scmp.lt.s32.totalorder %s7, 2
    // Predicated region
    $region13: #{ca_layer.2} parent=5 // pred_check
      %p89 = pneg %p88
    $region14: #{ca_layer.2} parent=5 // pred_check_branch
      %91 = sbr.rel (%p89) target = $region16
    $region15: #{ca_layer.2} parent=5 // pred_region
      // Predicated region
      $region17: #{ca_layer.2} parent=15 // pred_check
        %p92 = pneg %p41
      $region18: #{ca_layer.2} parent=15 // pred_check_branch
        %94 = sbr.rel (%p92) target = $region20
      $region19: #{ca_layer.2} parent=15 // pred_region
        %s95 = smul.u32 2, %s15
        %p96 = scmp.lt.s32.totalorder %s14, 1
        %s97 = scalar_select %p96, %s14, 1
        %p98 = scmp.lt.s32.totalorder %s95, 1
        %s99 = scalar_select %p98, %s95, 1
        %s100 = smul.addr %s97, 8
        %s101 = sadd.s32 %s99, %s100
        %s102 = smul.addr %s101, 8
        %s103 = scalar_lea.vmem %s0, %s102
        %s104 = smul.u32 2, %s15
      $region20: #{ca_layer.2} parent=15 // pred_fallthru
        _
    $region16: #{ca_layer.2} parent=5 // pred_fallthru
      _
    %p105 = scmp.le.s32.totalorder 1, %s7
    %p106 = scmp.lt.s32.totalorder %s7, 3
    %p107 = pnand %p105, %p106
    %p108 = pneg %p107
    // Predicated region
    $region21: #{ca_layer.2} parent=5 // pred_check
      _
    $region22: #{ca_layer.2} parent=5 // pred_check_branch
      %110 = sbr.rel (%p107) target = $region24
    $region23: #{ca_layer.2} parent=5 // pred_region
      %s111 = ssub.s32 %s7, 1
      %s112 = smul.u32 2, %s17
      %p113 = scmp.lt.s32.totalorder %s16, 1
      %s114 = scalar_select %p113, %s16, 1
      %p115 = scmp.lt.s32.totalorder %s112, 1
      %s116 = scalar_select %p115, %s112, 1
      %s117 = smul.addr %s114, 8
      %s118 = sadd.s32 %s116, %s117
      %s119 = smul.addr %s118, 8
      %s120 = scalar_lea.vmem %s0, %s119
      %p121 = pneg %p47
      %p122 = pneg %p44
      %p123 = pneg %p73
      %p124 = pneg %p70
      %p125 = scmp.lt.s32.totalorder %s16, 1
      %s126 = scalar_select %p125, %s16, 1
      %s127 = smul.addr %s126, 4
      %s128 = smul.addr %s127, 8
      %s129 = scalar_lea.vmem %s1, %s128
      %s130 = smul.u32 2, %s17
      %p131 = scmp.lt.s32.totalorder %s16, 1
      %s132 = scalar_select %p131, %s16, 1
      %p133 = scmp.lt.s32.totalorder %s130, 1
      %s134 = scalar_select %p133, %s130, 1
      %s135 = smul.addr %s132, 8
      %s136 = sadd.s32 %s134, %s135
      %s137 = smul.addr %s136, 8
      %s138 = scalar_lea.vmem %s0, %s137
      %s139 = smul.u32 2, %s17
      %p140 = scmp.lt.s32.totalorder %s16, 1
      %s141 = scalar_select %p140, %s16, 1
      %s142 = smul.addr %s141, 4
      %s143 = smul.addr %s142, 8
      %s144 = scalar_lea.vmem %s1, %s143
      %p145 = scmp.eq.s32.totalorder %s17, 0
      // Predicated region
      $region25: #{ca_layer.2} parent=23 // pred_check
        %p146 = pneg %p145
      $region26: #{ca_layer.2} parent=23 // pred_check_branch
        %148 = sbr.rel (%p146) target = $region28
      $region27: #{ca_layer.2} parent=23 // pred_region
        %vm149 = vcmask 7168
        %150 = vst.msk [vmem:[%s144] sm:$0xff] %vm149, 0.0
        %151 = vst.msk [vmem:[%s144 + $0x8] sm:$0xff] %vm149, 0.0
        %152 = vst.msk [vmem:[%s144 + $0x10] sm:$0xff] %vm149, 0.0
        %153 = vst.msk [vmem:[%s144 + $0x18] sm:$0xff] %vm149, 0.0
      $region28: #{ca_layer.2} parent=23 // pred_fallthru
        _
      %v154 = vld [vmem:[%s144] sm:$0xff]
      %v155 = vld [vmem:[%s144 + $0x8] sm:$0xff]
      %v156 = vld [vmem:[%s144 + $0x10] sm:$0xff]
      %v157 = vld [vmem:[%s144 + $0x18] sm:$0xff]
      %v158 = vld [vmem:[%s138] sm:$0xff]
      %v159 = vld [vmem:[%s138 + $0x8] sm:$0xff]
      %v160 = vld [vmem:[%s138 + $0x10] sm:$0xff]
      %v161 = vld [vmem:[%s138 + $0x18] sm:$0xff]
      %v162 = vld [vmem:[%s138 + $0x20] sm:$0xff]
      %v163 = vld [vmem:[%s138 + $0x28] sm:$0xff]
      %v164 = vld [vmem:[%s138 + $0x30] sm:$0xff]
      %v165 = vld [vmem:[%s138 + $0x38] sm:$0xff]
      %v166 = vadd.f32 %v158, %v159
      %167 = vadd.xlane.f32.xlu0 %v166
      %v168 = vpop.xlane.xlu0 %167
      %v169 = vadd.f32 %v160, %v161
      %170 = vadd.xlane.f32.xlu0 %v169
      %v171 = vpop.xlane.xlu0 %170
      %v172 = vadd.f32 %v162, %v163
      %173 = vadd.xlane.f32.xlu0 %v172
      %v174 = vpop.xlane.xlu0 %173
      %v175 = vadd.f32 %v164, %v165
      %176 = vadd.xlane.f32.xlu0 %v175
      %v177 = vpop.xlane.xlu0 %176
      %v178 = vadd.f32 %v154, %v168
      %v179 = vadd.f32 %v155, %v171
      %v180 = vadd.f32 %v156, %v174
      %v181 = vadd.f32 %v157, %v177
      %vm182 = vcmask 7168
      %183 = vst.msk [vmem:[%s144] sm:$0xff] %vm182, %v178
      %184 = vst.msk [vmem:[%s144 + $0x8] sm:$0xff] %vm182, %v179
      %185 = vst.msk [vmem:[%s144 + $0x10] sm:$0xff] %vm182, %v180
      %186 = vst.msk [vmem:[%s144 + $0x18] sm:$0xff] %vm182, %v181
      %p187 = scmp.lt.s32.totalorder %s16, 1
      %s188 = scalar_select %p187, %s16, 1
      %s189 = smul.addr %s188, 4
      %s190 = smul.addr %s189, 8
      %s191 = scalar_lea.vmem %s1, %s190
      // Predicated region
      $region29: #{ca_layer.2} parent=23 // pred_check
        %p192 = pneg %p70
      $region30: #{ca_layer.2} parent=23 // pred_check_branch
        %194 = sbr.rel (%p192) target = $region32
      $region31: #{ca_layer.2} parent=23 // pred_region
        _
      $region32: #{ca_layer.2} parent=23 // pred_fallthru
        _
    $region24: #{ca_layer.2} parent=5 // pred_fallthru
      _
    %p195 = scmp.le.s32.totalorder 2, %s7
    // Predicated region
    $region33: #{ca_layer.2} parent=5 // pred_check
      %p196 = pneg %p195
    $region34: #{ca_layer.2} parent=5 // pred_check_branch
      %198 = sbr.rel (%p196) target = $region36
    $region35: #{ca_layer.2} parent=5 // pred_region
      %s199 = ssub.s32 %s7, 2
      // Predicated region
      $region37: #{ca_layer.2} parent=35 // pred_check
        %p200 = pneg %p76
      $region38: #{ca_layer.2} parent=35 // pred_check_branch
        %202 = sbr.rel (%p200) target = $region40
      $region39: #{ca_layer.2} parent=35 // pred_region
        %p203 = scmp.lt.s32.totalorder %s18, 1
        %s204 = scalar_select %p203, %s18, 1
        %s205 = smul.addr %s204, 4
        %s206 = smul.addr %s205, 8
        %s207 = scalar_lea.vmem %s1, %s206
      $region40: #{ca_layer.2} parent=35 // pred_fallthru
        _
    $region36: #{ca_layer.2} parent=5 // pred_fallthru
      _
  $region6: #{ca_layer.2} parent=0 // loop_footer
    %s11 = sadd.s32 1, %s7
  $region7: #{ca_layer.2} parent=0 // loop_footer_branch
    %6 = sbr.rel target = $region3
  $region8: #{ca_layer.2} parent=0 // loop_exit
    _

// kernel: ca_layer.3
$region0: #{ca_layer.3}
  #allocation0 [shape = 'u32[]', space=smem, size = 0x4, offset = 0x4, fixed_abs, tag = 'smem constant byte address 0x4 - core index']
  #allocation1 [shape = 'u32[144,128]{1,0:T(1,128)}', space=vmem, size = 0x12000, scoped, tag = 'internal scratch']
  %s0 = inlined_call_operand.vmem [shape: f32[2,32,256], index: 0, kind: input, shape index: {}]
  %s1 = inlined_call_operand.vmem [shape: f32[2,32,1], index: 1, kind: input, shape index: {}]
  %s2 = inlined_call_operand.vmem [shape: f32[2,32,256], index: 2, kind: output, shape index: {}]
  %s3 = sld [smem:[#allocation0]]
  $region41: #{ca_layer.3} parent=0
    _
  %s5 = ssub.s32 1, %s3
  %s6 = scalar_select 0, %s5, %s3
  loop: start=0, step=1, limit=4
  $region2: #{ca_layer.3} parent=0 // loop_pre_header
    _
  $region3: #{ca_layer.3} parent=0 // loop_header
    %s8 = sphi 0, %s12
    %p9 = scmp.ge.s32.totalorder %s8, 4
    %s15 = sphi 0, %s27
    %s16 = sphi 0, %s23
    %s17 = sphi 0, %s15
    %s18 = sphi 0, %s16
    %s19 = sphi 0, %s17
    %s20 = sphi 0, %s18
    %s32 = sphi 0, %s34
    %s35 = sphi 0, %s32
    %s36 = sphi 0, %s35
    %s52 = sphi 0, %s36
    %s58 = sphi 0, %s60
    %s61 = sphi 0, %s58
    %s62 = sphi 0, %s61
    %s78 = sphi 0, %s62
    %s86 = sphi 0, %s88
    %s89 = sphi 0, %s86
    %s90 = sphi 0, %s89
    %s106 = sphi 0, %s90
  $region4: #{ca_layer.3} parent=0 // loop_header_branch
    %11 = sbr.rel (%p9) target = $region8
  $region5: #{ca_layer.3} parent=0 // loop_body
    %s13 = ssub.s32 %s8, 1
    %s14 = ssub.s32 %s8, 2
    %s21 = sadd.s32 1, %s16
    %p22 = scmp.ge.s32.totalorder %s21, 1
    %s23 = scalar_select %p22, 0, %s21
    %s24 = sadd.s32 1, %s15
    %s25 = scalar_select %p22, %s24, %s15
    %p26 = scmp.ge.s32.totalorder %s25, 2
    %s27 = scalar_select %p26, 0, %s25
    %s28 = ssub.s32 %s15, %s27
    %s29 = ssub.s32 %s16, %s23
    %s30 = sor.u32 %s28, %s29
    %p31 = scmp.eq.s32.totalorder %s30, 0
    %s33 = sadd.s32 %s32, 1
    %s34 = scalar_select %p31, %s32, %s33
    %p37 = pneg %p31
    %p38 = scmp.eq.s32.totalorder %s8, 1
    %p39 = por %p37, %p38
    %p40 = scmp.ne.s32.totalorder %s32, %s35
    %p41 = scmp.eq.s32.totalorder %s8, 0
    %p42 = por %p40, %p41
    %p43 = scmp.ne.s32.totalorder %s32, %s35
    %p44 = scmp.eq.s32.totalorder %s13, 1
    %p45 = por %p43, %p44
    %p46 = scmp.ne.s32.totalorder %s35, %s36
    %p47 = scmp.eq.s32.totalorder %s13, 0
    %p48 = por %p46, %p47
    %p49 = scmp.ne.s32.totalorder %s35, %s36
    %p50 = scmp.eq.s32.totalorder %s14, 1
    %p51 = por %p49, %p50
    %p53 = scmp.ne.s32.totalorder %s36, %s52
    %p54 = scmp.eq.s32.totalorder %s14, 0
    %p55 = por %p53, %p54
    %s56 = ssub.s32 %s15, %s27
    %p57 = scmp.eq.s32.totalorder %s56, 0
    %s59 = sadd.s32 %s58, 1
    %s60 = scalar_select %p57, %s58, %s59
    %p63 = pneg %p57
    %p64 = scmp.eq.s32.totalorder %s8, 1
    %p65 = por %p63, %p64
    %p66 = scmp.ne.s32.totalorder %s58, %s61
    %p67 = scmp.eq.s32.totalorder %s8, 0
    %p68 = por %p66, %p67
    %p69 = scmp.ne.s32.totalorder %s58, %s61
    %p70 = scmp.eq.s32.totalorder %s13, 1
    %p71 = por %p69, %p70
    %p72 = scmp.ne.s32.totalorder %s61, %s62
    %p73 = scmp.eq.s32.totalorder %s13, 0
    %p74 = por %p72, %p73
    %p75 = scmp.ne.s32.totalorder %s61, %s62
    %p76 = scmp.eq.s32.totalorder %s14, 1
    %p77 = por %p75, %p76
    %p79 = scmp.ne.s32.totalorder %s62, %s78
    %p80 = scmp.eq.s32.totalorder %s14, 0
    %p81 = por %p79, %p80
    %s82 = ssub.s32 %s15, %s27
    %s83 = ssub.s32 %s16, %s23
    %s84 = sor.u32 %s82, %s83
    %p85 = scmp.eq.s32.totalorder %s84, 0
    %s87 = sadd.s32 %s86, 1
    %s88 = scalar_select %p85, %s86, %s87
    %p91 = pneg %p85
    %p92 = scmp.eq.s32.totalorder %s8, 1
    %p93 = por %p91, %p92
    %p94 = scmp.ne.s32.totalorder %s86, %s89
    %p95 = scmp.eq.s32.totalorder %s8, 0
    %p96 = por %p94, %p95
    %p97 = scmp.ne.s32.totalorder %s86, %s89
    %p98 = scmp.eq.s32.totalorder %s13, 1
    %p99 = por %p97, %p98
    %p100 = scmp.ne.s32.totalorder %s89, %s90
    %p101 = scmp.eq.s32.totalorder %s13, 0
    %p102 = por %p100, %p101
    %p103 = scmp.ne.s32.totalorder %s89, %s90
    %p104 = scmp.eq.s32.totalorder %s14, 1
    %p105 = por %p103, %p104
    %p107 = scmp.ne.s32.totalorder %s90, %s106
    %p108 = scmp.eq.s32.totalorder %s14, 0
    %p109 = por %p107, %p108
    %p110 = scmp.le.s32.totalorder 1, %s8
    %p111 = scmp.lt.s32.totalorder %s8, 3
    %p112 = pnand %p110, %p111
    %p113 = pneg %p112
    // Predicated region
    $region9: #{ca_layer.3} parent=5 // pred_check
      _
    $region10: #{ca_layer.3} parent=5 // pred_check_branch
      %115 = sbr.rel (%p112) target = $region12
    $region11: #{ca_layer.3} parent=5 // pred_region
      %s116 = ssub.s32 %s8, 1
    $region12: #{ca_layer.3} parent=5 // pred_fallthru
      _
    %p117 = scmp.lt.s32.totalorder %s8, 2
    // Predicated region
    $region13: #{ca_layer.3} parent=5 // pred_check
      %p118 = pneg %p117
    $region14: #{ca_layer.3} parent=5 // pred_check_branch
      %120 = sbr.rel (%p118) target = $region16
    $region15: #{ca_layer.3} parent=5 // pred_region
      // Predicated region
      $region17: #{ca_layer.3} parent=15 // pred_check
        %p121 = pneg %p42
      $region18: #{ca_layer.3} parent=15 // pred_check_branch
        %123 = sbr.rel (%p121) target = $region20
      $region19: #{ca_layer.3} parent=15 // pred_region
        %s124 = smul.u32 2, %s16
        %p125 = scmp.lt.s32.totalorder %s15, 1
        %s126 = scalar_select %p125, %s15, 1
        %p127 = scmp.lt.s32.totalorder %s124, 1
        %s128 = scalar_select %p127, %s124, 1
        %s129 = smul.addr %s126, 8
        %s130 = sadd.s32 %s128, %s129
        %s131 = smul.addr %s130, 8
        %s132 = scalar_lea.vmem %s0, %s131
        %s133 = smul.u32 2, %s16
      $region20: #{ca_layer.3} parent=15 // pred_fallthru
        _
      // Predicated region
      $region21: #{ca_layer.3} parent=15 // pred_check
        %p134 = pneg %p68
      $region22: #{ca_layer.3} parent=15 // pred_check_branch
        %136 = sbr.rel (%p134) target = $region24
      $region23: #{ca_layer.3} parent=15 // pred_region
        %p137 = scmp.lt.s32.totalorder %s15, 1
        %s138 = scalar_select %p137, %s15, 1
        %s139 = smul.addr %s138, 4
        %s140 = smul.addr %s139, 8
        %s141 = scalar_lea.vmem %s1, %s140
      $region24: #{ca_layer.3} parent=15 // pred_fallthru
        _
    $region16: #{ca_layer.3} parent=5 // pred_fallthru
      _
    %p142 = scmp.le.s32.totalorder 1, %s8
    %p143 = scmp.lt.s32.totalorder %s8, 3
    %p144 = pnand %p142, %p143
    %p145 = pneg %p144
    // Predicated region
    $region25: #{ca_layer.3} parent=5 // pred_check
      _
    $region26: #{ca_layer.3} parent=5 // pred_check_branch
      %147 = sbr.rel (%p144) target = $region28
    $region27: #{ca_layer.3} parent=5 // pred_region
      %s148 = ssub.s32 %s8, 1
      %s149 = smul.u32 2, %s18
      %p150 = scmp.lt.s32.totalorder %s17, 1
      %s151 = scalar_select %p150, %s17, 1
      %p152 = scmp.lt.s32.totalorder %s149, 1
      %s153 = scalar_select %p152, %s149, 1
      %s154 = smul.addr %s151, 8
      %s155 = sadd.s32 %s153, %s154
      %s156 = smul.addr %s155, 8
      %s157 = scalar_lea.vmem %s0, %s156
      %p158 = pneg %p48
      %p159 = pneg %p45
      %p160 = scmp.lt.s32.totalorder %s17, 1
      %s161 = scalar_select %p160, %s17, 1
      %s162 = smul.addr %s161, 4
      %s163 = smul.addr %s162, 8
      %s164 = scalar_lea.vmem %s1, %s163
      %p165 = pneg %p74
      %p166 = pneg %p71
      %p167 = pneg %p102
      %p168 = pneg %p99
      %s169 = smul.u32 2, %s18
      %p170 = scmp.lt.s32.totalorder %s17, 1
      %s171 = scalar_select %p170, %s17, 1
      %p172 = scmp.lt.s32.totalorder %s169, 1
      %s173 = scalar_select %p172, %s169, 1
      %s174 = smul.addr %s171, 8
      %s175 = sadd.s32 %s173, %s174
      %s176 = smul.addr %s175, 8
      %s177 = scalar_lea.vmem %s2, %s176
      %s178 = smul.u32 2, %s18
      %p179 = scmp.lt.s32.totalorder %s17, 1
      %s180 = scalar_select %p179, %s17, 1
      %p181 = scmp.lt.s32.totalorder %s178, 1
      %s182 = scalar_select %p181, %s178, 1
      %s183 = smul.addr %s180, 8
      %s184 = sadd.s32 %s182, %s183
      %s185 = smul.addr %s184, 8
      %s186 = scalar_lea.vmem %s0, %s185
      %s187 = smul.u32 2, %s18
      %p188 = scmp.lt.s32.totalorder %s17, 1
      %s189 = scalar_select %p188, %s17, 1
      %s190 = smul.addr %s189, 4
      %s191 = smul.addr %s190, 8
      %s192 = scalar_lea.vmem %s1, %s191
      %s193 = smul.u32 2, %s18
      %p194 = scmp.lt.s32.totalorder %s17, 1
      %s195 = scalar_select %p194, %s17, 1
      %p196 = scmp.lt.s32.totalorder %s193, 1
      %s197 = scalar_select %p196, %s193, 1
      %s198 = smul.addr %s195, 8
      %s199 = sadd.s32 %s197, %s198
      %s200 = smul.addr %s199, 8
      %s201 = scalar_lea.vmem %s2, %s200
      %s202 = smul.u32 2, %s18
      %v203 = vld [vmem:[%s186] sm:$0xff]
      %v204 = vld [vmem:[%s186 + $0x8] sm:$0xff]
      %v205 = vld [vmem:[%s186 + $0x10] sm:$0xff]
      %v206 = vld [vmem:[%s186 + $0x18] sm:$0xff]
      %v207 = vld [vmem:[%s186 + $0x20] sm:$0xff]
      %v208 = vld [vmem:[%s186 + $0x28] sm:$0xff]
      %v209 = vld [vmem:[%s186 + $0x30] sm:$0xff]
      %v210 = vld [vmem:[%s186 + $0x38] sm:$0xff]
      %v211 = vld [vmem:[%s192] sm:$0xff]
      %v212 = vld [vmem:[%s192 + $0x8] sm:$0xff]
      %v213 = vld [vmem:[%s192 + $0x10] sm:$0xff]
      %v214 = vld [vmem:[%s192 + $0x18] sm:$0xff]
      %216 = vset.pattern.permute.xlu0 0
      %217 = vperm.xlu0 %216, %v211
      %v218 = vpop.permute.xlu0 %217
      %221 = vset.pattern.permute.xlu0 0
      %222 = vperm.xlu0 %221, %v212
      %v223 = vpop.permute.xlu0 %222
      %226 = vset.pattern.permute.xlu0 0
      %227 = vperm.xlu0 %226, %v213
      %v228 = vpop.permute.xlu0 %227
      %231 = vset.pattern.permute.xlu0 0
      %232 = vperm.xlu0 %231, %v214
      %v233 = vpop.permute.xlu0 %232
      %v235 = vmul.f32 %v203, %v218
      %v236 = vmul.f32 %v204, %v218
      %v237 = vmul.f32 %v205, %v223
      %v238 = vmul.f32 %v206, %v223
      %v239 = vmul.f32 %v207, %v228
      %v240 = vmul.f32 %v208, %v228
      %v241 = vmul.f32 %v209, %v233
      %v242 = vmul.f32 %v210, %v233
      %243 = vst [vmem:[%s201] sm:$0xff] %v235
      %244 = vst [vmem:[%s201 + $0x8] sm:$0xff] %v236
      %245 = vst [vmem:[%s201 + $0x10] sm:$0xff] %v237
      %246 = vst [vmem:[%s201 + $0x18] sm:$0xff] %v238
      %247 = vst [vmem:[%s201 + $0x20] sm:$0xff] %v239
      %248 = vst [vmem:[%s201 + $0x28] sm:$0xff] %v240
      %249 = vst [vmem:[%s201 + $0x30] sm:$0xff] %v241
      %250 = vst [vmem:[%s201 + $0x38] sm:$0xff] %v242
      %s251 = smul.u32 2, %s18
      %p252 = scmp.lt.s32.totalorder %s17, 1
      %s253 = scalar_select %p252, %s17, 1
      %p254 = scmp.lt.s32.totalorder %s251, 1
      %s255 = scalar_select %p254, %s251, 1
      %s256 = smul.addr %s253, 8
      %s257 = sadd.s32 %s255, %s256
      %s258 = smul.addr %s257, 8
      %s259 = scalar_lea.vmem %s2, %s258
      // Predicated region
      $region29: #{ca_layer.3} parent=27 // pred_check
        %p260 = pneg %p99
      $region30: #{ca_layer.3} parent=27 // pred_check_branch
        %262 = sbr.rel (%p260) target = $region32
      $region31: #{ca_layer.3} parent=27 // pred_region
        %s263 = smul.u32 2, %s18
      $region32: #{ca_layer.3} parent=27 // pred_fallthru
        _
    $region28: #{ca_layer.3} parent=5 // pred_fallthru
      _
    %p264 = scmp.le.s32.totalorder 2, %s8
    // Predicated region
    $region33: #{ca_layer.3} parent=5 // pred_check
      %p265 = pneg %p264
    $region34: #{ca_layer.3} parent=5 // pred_check_branch
      %267 = sbr.rel (%p265) target = $region36
    $region35: #{ca_layer.3} parent=5 // pred_region
      %s268 = ssub.s32 %s8, 2
      // Predicated region
      $region37: #{ca_layer.3} parent=35 // pred_check
        %p269 = pneg %p105
      $region38: #{ca_layer.3} parent=35 // pred_check_branch
        %271 = sbr.rel (%p269) target = $region40
      $region39: #{ca_layer.3} parent=35 // pred_region
        %s272 = smul.u32 2, %s20
        %p273 = scmp.lt.s32.totalorder %s19, 1
        %s274 = scalar_select %p273, %s19, 1
        %p275 = scmp.lt.s32.totalorder %s272, 1
        %s276 = scalar_select %p275, %s272, 1
        %s277 = smul.addr %s274, 8
        %s278 = sadd.s32 %s276, %s277
        %s279 = smul.addr %s278, 8
        %s280 = scalar_lea.vmem %s2, %s279
      $region40: #{ca_layer.3} parent=35 // pred_fallthru
        _
    $region36: #{ca_layer.3} parent=5 // pred_fallthru
      _
  $region6: #{ca_layer.3} parent=0 // loop_footer
    %s12 = sadd.s32 1, %s8
  $region7: #{ca_layer.3} parent=0 // loop_footer_branch
    %7 = sbr.rel target = $region3
  $region8: #{ca_layer.3} parent=0 // loop_exit
    _

</llo_original>
